<compile_context>
chip_gen: v7x
topology: tpu7x:2x2x1
jax: 0.10.0
libtpu: 0.0.40
codegen_flags: <defaults>
</compile_context>

<pallas_src>
import functools

import jax
import jax.numpy as jnp
from jax import lax
from jax.experimental import pallas as pl
from jax.experimental.pallas import tpu as pltpu

_EPS = 1e-7


def _pkt_kernel(fs_ref, ft_ref, out_ref, gs_acc, gt_acc, *, tk, d_total, mask_tail):
    """One reduction step over a (B, TK) feature tile.

    fs_ref, ft_ref : (B, TK) student / teacher feature tiles (native dtype)
    out_ref        : (1, 1) f32 scalar loss in SMEM
    gs_acc, gt_acc : (B, B) f32 Gram accumulators (VMEM scratch, grid-resident)
    """
    k = pl.program_id(0)

    @pl.when(k == 0)
    def _init():
        gs_acc[...] = jnp.zeros_like(gs_acc)
        gt_acc[...] = jnp.zeros_like(gt_acc)

    fs = fs_ref[...]
    ft = ft_ref[...]

    if mask_tail:
        # Ragged last K tile: zero the out-of-range lanes (unspecified DMA padding)
        # before feeding the MXU. Couple of VPU selects per step -> free slots.
        rem = d_total - k * tk
        cols = lax.broadcasted_iota(jnp.int32, fs.shape, 1)
        valid = cols < rem
        fs = jnp.where(valid, fs, jnp.zeros_like(fs))
        ft = jnp.where(valid, ft, jnp.zeros_like(ft))

    dn = (((1,), (1,)), ((), ()))  # contract feature dim of both operands: (B,TK)x(B,TK)->(B,B)
    gs_acc[...] += lax.dot_general(fs, fs, dn, preferred_element_type=jnp.float32)
    gt_acc[...] += lax.dot_general(ft, ft, dn, preferred_element_type=jnp.float32)

    @pl.when(k == pl.num_programs(0) - 1)
    def _finalize():
        gs = gs_acc[...]
        gt = gt_acc[...]
        b = gs.shape[0]

        rows = lax.broadcasted_iota(jnp.int32, (b, b), 0)
        cols2 = lax.broadcasted_iota(jnp.int32, (b, b), 1)
        diag = rows == cols2

        def cosine(g):
            # Extract the diagonal as (B,1) and (1,B) directly (no transpose / relayout).
            d_col = jnp.sum(jnp.where(diag, g, 0.0), axis=1, keepdims=True)
            d_row = jnp.sum(jnp.where(diag, g, 0.0), axis=0, keepdims=True)
            inv_col = pl.reciprocal(jnp.sqrt(d_col) + _EPS, approx=False)
            inv_row = pl.reciprocal(jnp.sqrt(d_row) + _EPS, approx=False)
            return g * inv_col * inv_row

        model_sim = (cosine(gs) + 1.0) * 0.5
        target_sim = (cosine(gt) + 1.0) * 0.5
        model_sim = model_sim * pl.reciprocal(
            jnp.sum(model_sim, axis=1, keepdims=True), approx=False)
        target_sim = target_sim * pl.reciprocal(
            jnp.sum(target_sim, axis=1, keepdims=True), approx=False)

        # KL term as a log-difference (drops the quotient; logs go to the EUP).
        loss = jnp.mean(
            target_sim * (jnp.log(target_sim + _EPS) - jnp.log(model_sim + _EPS)))
        out_ref[0, 0] = loss


def _select_tiling(B, D, itemsize, max_block_k=None):
    """Pick the K-tile width and VMEM limit from batch size, dtype and chip VMEM."""
    try:
        vmem_cap = int(pltpu.get_tpu_info().vmem_capacity_bytes)
    except Exception:  # pragma: no cover - conservative fallback (v7x per-core VMEM)
        vmem_cap = 64 << 20

    gram_bytes = 2 * B * B * 4
    d_aligned = -(-D // 128) * 128

    # 2 inputs x 2 pipeline buffers of (B, tk) + the two Gram accumulators must fit
    # comfortably inside physical VMEM (keep ~25% headroom for compiler scratch).
    budget = int(vmem_cap * 0.75) - gram_bytes
    per_col_bytes = 2 * 2 * B * itemsize
    tk_budget = budget // per_col_bytes if budget > 0 else 128

    # Target ~4 MiB of DMA (both inputs) per grid step so the ~0.35us per-step
    # overhead is well amortised against HBM bandwidth on v5e/v6e/v7x.
    target_step_bytes = 4 << 20
    tk_target = max(128, target_step_bytes // (2 * B * itemsize))

    tk = min(tk_budget, tk_target, d_aligned)
    if max_block_k is not None:
        tk = min(tk, max_block_k)
    tk = max(128, (tk // 128) * 128)
    if tk >= D:
        # Single tile covering the feature dim exactly (block == full array dims,
        # so no lane-alignment requirement and no tail masking needed).
        tk = D

    bufs_bytes = 2 * 2 * B * tk * itemsize
    vmem_limit = min(vmem_cap, max(bufs_bytes + gram_bytes + (8 << 20), 32 << 20))
    return tk, vmem_limit


def pkt_cosine_similarity_loss(f_s_last, f_t_last, *, max_block_k=None):
    """f_s_last, f_t_last: (B, D) feature matrices (native dtype; bf16/f32 both fine)."""
    assert f_s_last.shape == f_t_last.shape
    B, D = f_s_last.shape
    itemsize = jnp.dtype(f_s_last.dtype).itemsize

    tk, vmem_limit = _select_tiling(B, D, itemsize, max_block_k)
    num_k = pl.cdiv(D, tk)
    mask_tail = (D % tk) != 0

    kernel = functools.partial(_pkt_kernel, tk=tk, d_total=D, mask_tail=mask_tail)

    grid_spec = pltpu.PrefetchScalarGridSpec(
        num_scalar_prefetch=0,
        grid=(num_k,),
        in_specs=[
            # NOTE: if per-step compute ever exposes DMA issue latency (tiny B),
            # sweep pipeline_mode=pl.Buffered(3) on these two specs.
            pl.BlockSpec((B, tk), lambda k: (0, k)),
            pl.BlockSpec((B, tk), lambda k: (0, k)),
        ],
        out_specs=pl.BlockSpec(memory_space=pltpu.MemorySpace.SMEM),
        scratch_shapes=[
            pltpu.VMEM((B, B), jnp.float32),
            pltpu.VMEM((B, B), jnp.float32),
        ],
    )

    out = pl.pallas_call(
        kernel,
        out_shape=jax.ShapeDtypeStruct((1, 1), jnp.float32),
        grid_spec=grid_spec,
        compiler_params=pltpu.CompilerParams(
            dimension_semantics=("arbitrary",),
            vmem_limit_bytes=vmem_limit,
        ),
    )(f_s_last, f_t_last)
    return out[0, 0]


def pkt_forward(f_s, f_t, out_student=None, out_teacher=None, targets=None):
    """Mirror of PKT.forward: only f_s[-1] and f_t[-1] are used."""
    return pkt_cosine_similarity_loss(f_s[-1], f_t[-1])


def _reference_loss(fs, ft, eps=_EPS):
    """Pure-JAX reference mirroring the PyTorch code."""
    fs = fs.astype(jnp.float32)
    ft = ft.astype(jnp.float32)
    fsn = jnp.sqrt(jnp.sum(fs ** 2, axis=1, keepdims=True))
    fs = fs / (fsn + eps)
    fs = jnp.where(jnp.isnan(fs), 0.0, fs)
    ftn = jnp.sqrt(jnp.sum(ft ** 2, axis=1, keepdims=True))
    ft = ft / (ftn + eps)
    ft = jnp.where(jnp.isnan(ft), 0.0, ft)
    ms = (fs @ fs.T + 1.0) / 2.0
    ts = (ft @ ft.T + 1.0) / 2.0
    ms = ms / jnp.sum(ms, axis=1, keepdims=True)
    ts = ts / jnp.sum(ts, axis=1, keepdims=True)
    return jnp.mean(ts * jnp.log((ts + eps) / (ms + eps)))


if __name__ == "__main__":
    key = jax.random.PRNGKey(0)
    k1, k2, k3, k4 = jax.random.split(key, 4)

    # Feature lists like the distiller passes: only the last entries matter.
    B, D = 8, 32
    C = 10
    f_s = [jax.random.normal(k1, (B, 64), jnp.float32),
           jax.random.normal(k2, (B, D), jnp.float32)]
    f_t = [jax.random.normal(k3, (B, 64), jnp.float32),
           jax.random.normal(k4, (B, D), jnp.float32)]
    out_student = jnp.zeros((B, C), jnp.float32)   # unused by forward
    out_teacher = jnp.zeros((B, C), jnp.float32)   # unused by forward
    targets = jnp.zeros((B,), jnp.int32)           # unused by forward

    loss = jax.block_until_ready(pkt_forward(f_s, f_t, out_student, out_teacher, targets))
    ref = _reference_loss(f_s[-1], f_t[-1])
    assert jnp.allclose(loss, ref, rtol=1e-4, atol=1e-6), (loss, ref)

    # Ragged-D multi-tile path: D=1000 is not 128-aligned; capping the K tile at 256
    # forces a 4-step K reduction with an in-kernel masked 232-column tail (no jnp.pad).
    B2, D2 = 16, 1000
    ka, kb = jax.random.split(k1)
    fs2 = jax.random.normal(ka, (B2, D2), jnp.float32)
    ft2 = jax.random.normal(kb, (B2, D2), jnp.float32)
    loss2 = jax.block_until_ready(pkt_cosine_similarity_loss(fs2, ft2, max_block_k=256))
    ref2 = _reference_loss(fs2, ft2)
    assert jnp.allclose(loss2, ref2, rtol=1e-4, atol=1e-6), (loss2, ref2)

    # Auto-sized tile (single block covering D exactly), bf16 straight into the MXU
    # with f32 accumulation — no wrapper-side upcast copy.
    fs3 = fs2.astype(jnp.bfloat16)
    ft3 = ft2.astype(jnp.bfloat16)
    loss3 = jax.block_until_ready(pkt_cosine_similarity_loss(fs3, ft3))
    ref3 = _reference_loss(fs3, ft3)
    assert jnp.allclose(loss3, ref3, rtol=1e-2, atol=1e-4), (loss3, ref3)

    print("KERNEL_OK")
</pallas_src>

<mosaic_0001>
module attributes {stable_mosaic.version = 11 : i64} {
  func.func @_pkt_kernel(%arg0: i32, %arg1: memref<8x32xf32, #tpu.memory_space<vmem>>, %arg2: memref<8x32xf32, #tpu.memory_space<vmem>>, %arg3: memref<1x1xf32, #tpu.memory_space<smem>>, %arg4: memref<8x8xf32, #tpu.memory_space<vmem>>, %arg5: memref<8x8xf32, #tpu.memory_space<vmem>>) attributes {dimension_semantics = [#tpu.dimension_semantics<arbitrary>], iteration_bounds = array<i64: 1>, scalar_prefetch = 0 : i64, scratch_operands = 2 : i64, tpu.core_type = #tpu.core_type<tc>, window_params = [{transform_indices = @transform_0, window_bounds = array<i64: 8, 32>}, {transform_indices = @transform_1, window_bounds = array<i64: 8, 32>}, {transform_indices = @transform_2, window_bounds = array<i64: 1, 1>}]} {
    %c0_i32 = arith.constant 0 : i32
    %0 = arith.cmpi eq, %arg0, %c0_i32 : i32
    %1 = arith.extui %0 : i1 to i32
    %c0_i32_0 = arith.constant 0 : i32
    %2 = arith.cmpi ne, %1, %c0_i32_0 : i32
    scf.if %2 {
      %cst_15 = arith.constant 0.000000e+00 : f32
      %16 = vector.broadcast %cst_15 : f32 to vector<8x8xf32>
      %c0_16 = arith.constant 0 : index
      %c0_17 = arith.constant 0 : index
      %17 = vector.load %arg4[%c0_16, %c0_17] : memref<8x8xf32, #tpu.memory_space<vmem>>, vector<8x8xf32>
      tpu.vector_store %arg4[%c0_16, %c0_17], %16 {strides = array<i32>} : memref<8x8xf32, #tpu.memory_space<vmem>>, vector<8x8xf32>,
      %cst_18 = arith.constant 0.000000e+00 : f32
      %18 = vector.broadcast %cst_18 : f32 to vector<8x8xf32>
      %c0_19 = arith.constant 0 : index
      %c0_20 = arith.constant 0 : index
      %19 = vector.load %arg5[%c0_19, %c0_20] : memref<8x8xf32, #tpu.memory_space<vmem>>, vector<8x8xf32>
      tpu.vector_store %arg5[%c0_19, %c0_20], %18 {strides = array<i32>} : memref<8x8xf32, #tpu.memory_space<vmem>>, vector<8x8xf32>,
    } else {
    }
    %c0 = arith.constant 0 : index
    %c0_1 = arith.constant 0 : index
    %3 = vector.load %arg1[%c0, %c0_1] : memref<8x32xf32, #tpu.memory_space<vmem>>, vector<8x32xf32>
    %c0_2 = arith.constant 0 : index
    %c0_3 = arith.constant 0 : index
    %4 = vector.load %arg2[%c0_2, %c0_3] : memref<8x32xf32, #tpu.memory_space<vmem>>, vector<8x32xf32>
    %c0_4 = arith.constant 0 : index
    %c0_5 = arith.constant 0 : index
    %5 = vector.load %arg4[%c0_4, %c0_5] : memref<8x8xf32, #tpu.memory_space<vmem>>, vector<8x8xf32>
    %cst = arith.constant dense<0.000000e+00> : vector<8x8xf32>
    %6 = tpu.matmul %3, %3, %cst {dimension_numbers = #tpu.dot_dimension_numbers<[1], [1], [0], [0], [0, 0, 1, 0], [], []>} : vector<8x32xf32>, vector<8x32xf32>, vector<8x8xf32> -> vector<8x8xf32>
    %7 = arith.addf %5, %6 : vector<8x8xf32>
    %c0_6 = arith.constant 0 : index
    %c0_7 = arith.constant 0 : index
    %8 = vector.load %arg4[%c0_6, %c0_7] : memref<8x8xf32, #tpu.memory_space<vmem>>, vector<8x8xf32>
    tpu.vector_store %arg4[%c0_6, %c0_7], %7 {strides = array<i32>} : memref<8x8xf32, #tpu.memory_space<vmem>>, vector<8x8xf32>,
    %c0_8 = arith.constant 0 : index
    %c0_9 = arith.constant 0 : index
    %9 = vector.load %arg5[%c0_8, %c0_9] : memref<8x8xf32, #tpu.memory_space<vmem>>, vector<8x8xf32>
    %cst_10 = arith.constant dense<0.000000e+00> : vector<8x8xf32>
    %10 = tpu.matmul %4, %4, %cst_10 {dimension_numbers = #tpu.dot_dimension_numbers<[1], [1], [0], [0], [0, 0, 1, 0], [], []>} : vector<8x32xf32>, vector<8x32xf32>, vector<8x8xf32> -> vector<8x8xf32>
    %11 = arith.addf %9, %10 : vector<8x8xf32>
    %c0_11 = arith.constant 0 : index
    %c0_12 = arith.constant 0 : index
    %12 = vector.load %arg5[%c0_11, %c0_12] : memref<8x8xf32, #tpu.memory_space<vmem>>, vector<8x8xf32>
    tpu.vector_store %arg5[%c0_11, %c0_12], %11 {strides = array<i32>} : memref<8x8xf32, #tpu.memory_space<vmem>>, vector<8x8xf32>,
    %c0_i32_13 = arith.constant 0 : i32
    %13 = arith.cmpi eq, %arg0, %c0_i32_13 : i32
    %14 = arith.extui %13 : i1 to i32
    %c0_i32_14 = arith.constant 0 : i32
    %15 = arith.cmpi ne, %14, %c0_i32_14 : i32
    scf.if %15 {
      %c0_15 = arith.constant 0 : index
      %c0_16 = arith.constant 0 : index
      %16 = vector.load %arg4[%c0_15, %c0_16] : memref<8x8xf32, #tpu.memory_space<vmem>>, vector<8x8xf32>
      %c0_17 = arith.constant 0 : index
      %c0_18 = arith.constant 0 : index
      %17 = vector.load %arg5[%c0_17, %c0_18] : memref<8x8xf32, #tpu.memory_space<vmem>>, vector<8x8xf32>
      %18 = tpu.iota {dimensions = array<i32: 0>} : vector<8x8xi32>
      %19 = tpu.iota {dimensions = array<i32: 1>} : vector<8x8xi32>
      %20 = arith.cmpi eq, %18, %19 : vector<8x8xi32>
      %cst_19 = arith.constant 0.000000e+00 : f32
      %21 = vector.broadcast %cst_19 : f32 to vector<8x8xf32>
      %22 = arith.select %20, %16, %21 : vector<8x8xi1>, vector<8x8xf32>
      %cst_20 = arith.constant dense<0.000000e+00> : vector<8xf32>
      %23 = vector.multi_reduction <add>, %22, %cst_20 [1] : vector<8x8xf32> to vector<8xf32>
      %24 = vector.shape_cast %23 : vector<8xf32> to vector<8x1xf32>
      %cst_21 = arith.constant 0.000000e+00 : f32
      %25 = vector.broadcast %cst_21 : f32 to vector<8x8xf32>
      %26 = arith.select %20, %16, %25 : vector<8x8xi1>, vector<8x8xf32>
      %cst_22 = arith.constant dense<0.000000e+00> : vector<8xf32>
      %27 = vector.multi_reduction <add>, %26, %cst_22 [0] : vector<8x8xf32> to vector<8xf32>
      %28 = vector.shape_cast %27 : vector<8xf32> to vector<1x8xf32>
      %29 = math.sqrt %24 : vector<8x1xf32>
      %cst_23 = arith.constant 1.000000e-07 : f32
      %30 = vector.broadcast %cst_23 : f32 to vector<8x1xf32>
      %31 = arith.addf %29, %30 : vector<8x1xf32>
      %32 = tpu.reciprocal %31 : vector<8x1xf32> -> vector<8x1xf32>
      %33 = math.sqrt %28 : vector<1x8xf32>
      %cst_24 = arith.constant 1.000000e-07 : f32
      %34 = vector.broadcast %cst_24 : f32 to vector<1x8xf32>
      %35 = arith.addf %33, %34 : vector<1x8xf32>
      %36 = tpu.reciprocal %35 : vector<1x8xf32> -> vector<1x8xf32>
      %37 = vector.broadcast %32 : vector<8x1xf32> to vector<8x8xf32>
      %38 = arith.mulf %16, %37 : vector<8x8xf32>
      %39 = vector.broadcast %36 : vector<1x8xf32> to vector<8x8xf32>
      %40 = arith.mulf %38, %39 : vector<8x8xf32>
      %cst_25 = arith.constant 1.000000e+00 : f32
      %41 = vector.broadcast %cst_25 : f32 to vector<8x8xf32>
      %42 = arith.addf %40, %41 : vector<8x8xf32>
      %cst_26 = arith.constant 5.000000e-01 : f32
      %43 = vector.broadcast %cst_26 : f32 to vector<8x8xf32>
      %44 = arith.mulf %42, %43 : vector<8x8xf32>
      %cst_27 = arith.constant 0.000000e+00 : f32
      %45 = vector.broadcast %cst_27 : f32 to vector<8x8xf32>
      %46 = arith.select %20, %17, %45 : vector<8x8xi1>, vector<8x8xf32>
      %cst_28 = arith.constant dense<0.000000e+00> : vector<8xf32>
      %47 = vector.multi_reduction <add>, %46, %cst_28 [1] : vector<8x8xf32> to vector<8xf32>
      %48 = vector.shape_cast %47 : vector<8xf32> to vector<8x1xf32>
      %cst_29 = arith.constant 0.000000e+00 : f32
      %49 = vector.broadcast %cst_29 : f32 to vector<8x8xf32>
      %50 = arith.select %20, %17, %49 : vector<8x8xi1>, vector<8x8xf32>
      %cst_30 = arith.constant dense<0.000000e+00> : vector<8xf32>
      %51 = vector.multi_reduction <add>, %50, %cst_30 [0] : vector<8x8xf32> to vector<8xf32>
      %52 = vector.shape_cast %51 : vector<8xf32> to vector<1x8xf32>
      %53 = math.sqrt %48 : vector<8x1xf32>
      %cst_31 = arith.constant 1.000000e-07 : f32
      %54 = vector.broadcast %cst_31 : f32 to vector<8x1xf32>
      %55 = arith.addf %53, %54 : vector<8x1xf32>
      %56 = tpu.reciprocal %55 : vector<8x1xf32> -> vector<8x1xf32>
      %57 = math.sqrt %52 : vector<1x8xf32>
      %cst_32 = arith.constant 1.000000e-07 : f32
      %58 = vector.broadcast %cst_32 : f32 to vector<1x8xf32>
      %59 = arith.addf %57, %58 : vector<1x8xf32>
      %60 = tpu.reciprocal %59 : vector<1x8xf32> -> vector<1x8xf32>
      %61 = vector.broadcast %56 : vector<8x1xf32> to vector<8x8xf32>
      %62 = arith.mulf %17, %61 : vector<8x8xf32>
      %63 = vector.broadcast %60 : vector<1x8xf32> to vector<8x8xf32>
      %64 = arith.mulf %62, %63 : vector<8x8xf32>
      %cst_33 = arith.constant 1.000000e+00 : f32
      %65 = vector.broadcast %cst_33 : f32 to vector<8x8xf32>
      %66 = arith.addf %64, %65 : vector<8x8xf32>
      %cst_34 = arith.constant 5.000000e-01 : f32
      %67 = vector.broadcast %cst_34 : f32 to vector<8x8xf32>
      %68 = arith.mulf %66, %67 : vector<8x8xf32>
      %cst_35 = arith.constant dense<0.000000e+00> : vector<8xf32>
      %69 = vector.multi_reduction <add>, %44, %cst_35 [1] : vector<8x8xf32> to vector<8xf32>
      %70 = vector.shape_cast %69 : vector<8xf32> to vector<8x1xf32>
      %71 = tpu.reciprocal %70 : vector<8x1xf32> -> vector<8x1xf32>
      %72 = vector.broadcast %71 : vector<8x1xf32> to vector<8x8xf32>
      %73 = arith.mulf %44, %72 : vector<8x8xf32>
      %cst_36 = arith.constant dense<0.000000e+00> : vector<8xf32>
      %74 = vector.multi_reduction <add>, %68, %cst_36 [1] : vector<8x8xf32> to vector<8xf32>
      %75 = vector.shape_cast %74 : vector<8xf32> to vector<8x1xf32>
      %76 = tpu.reciprocal %75 : vector<8x1xf32> -> vector<8x1xf32>
      %77 = vector.broadcast %76 : vector<8x1xf32> to vector<8x8xf32>
      %78 = arith.mulf %68, %77 : vector<8x8xf32>
      %cst_37 = arith.constant 1.000000e-07 : f32
      %79 = vector.broadcast %cst_37 : f32 to vector<8x8xf32>
      %80 = arith.addf %78, %79 : vector<8x8xf32>
      %81 = math.log %80 : vector<8x8xf32>
      %cst_38 = arith.constant 1.000000e-07 : f32
      %82 = vector.broadcast %cst_38 : f32 to vector<8x8xf32>
      %83 = arith.addf %73, %82 : vector<8x8xf32>
      %84 = math.log %83 : vector<8x8xf32>
      %85 = arith.subf %81, %84 : vector<8x8xf32>
      %86 = arith.mulf %78, %85 : vector<8x8xf32>
      %87 = vector.shape_cast %86 : vector<8x8xf32> to vector<1x8x8xf32>
      %cst_39 = arith.constant dense<0.000000e+00> : vector<1xf32>
      %88 = vector.multi_reduction <add>, %87, %cst_39 [1, 2] : vector<1x8x8xf32> to vector<1xf32>
      %89 = vector.shape_cast %88 : vector<1xf32> to vector<1x1x1xf32>
      %90 = vector.extract %89[0, 0, 0] : f32 from vector<1x1x1xf32>
      %cst_40 = arith.constant 6.400000e+01 : f32
      %91 = arith.divf %90, %cst_40 : f32
      %c0_41 = arith.constant 0 : index
      %c0_42 = arith.constant 0 : index
      %92 = memref.load %arg3[%c0_41, %c0_42] : memref<1x1xf32, #tpu.memory_space<smem>>
      memref.store %91, %arg3[%c0_41, %c0_42] : memref<1x1xf32, #tpu.memory_space<smem>>
    } else {
    }
    return
  }
  func.func @transform_0(%arg0: i32) -> (i32, i32) {
    %c0_i32 = arith.constant 0 : i32
    %c0_i32_0 = arith.constant 0 : i32
    return %c0_i32, %arg0 : i32, i32
  }
  func.func @transform_1(%arg0: i32) -> (i32, i32) {
    %c0_i32 = arith.constant 0 : i32
    %c0_i32_0 = arith.constant 0 : i32
    return %c0_i32, %arg0 : i32, i32
  }
  func.func @transform_2(%arg0: i32) -> (i32, i32) {
    %c0_i32 = arith.constant 0 : i32
    %c0_i32_0 = arith.constant 0 : i32
    %c0_i32_1 = arith.constant 0 : i32
    return %c0_i32, %c0_i32_0 : i32, i32
  }
}

</mosaic_0001>

<llo_original>
// kernel: tpu_custom_call.1
$region0: #{tpu_custom_call.1}
  #allocation0 [shape = 'u32[]', space=smem, size = 0x4, offset = 0x4, fixed_abs, tag = 'smem constant byte address 0x4 - core index']
  #allocation1 [shape = 'u32[144,128]{1,0:T(1,128)}', space=vmem, size = 0x12000, scoped, tag = 'internal scratch']
  #allocation2 [shape = 'f32[8,8]{1,0:T(8,128)}', space=vmem, size = 0x1000, scoped, tag = 'scratch operand']
  #allocation3 [shape = 'f32[8,8]{1,0:T(8,128)}', space=vmem, size = 0x1000, scoped, tag = 'scratch operand']
  %s0 = inlined_call_operand.hbm [shape: f32[8,32], index: 0, kind: input, shape index: {}]
  %s1 = inlined_call_operand.hbm [shape: f32[8,32], index: 1, kind: input, shape index: {}]
  %s2 = inlined_call_operand.hbm [shape: f32[1,1], index: 2, kind: output, shape index: {}]
  %s3 = sld [smem:[#allocation0]]
  $region34: #{tpu_custom_call.1} parent=0
    _
  %s5 = ssub.s32 1, %s3
  %s6 = scalar_select 0, %s5, %s3
  $region1: #{tpu_custom_call.1} parent=0
    #allocation4 [shape = 'u8[4096]{0}', space=vmem, size = 0x1000, scoped, tag = 'input window, operand 0, single buffered']
    #allocation5 [shape = 's32[1]{0}', space=sflag, size = 0x4, scoped, tag = 'scoped memory for tpu_custom_call.1']
    #allocation6 [shape = 's32[1]{0}', space=sflag, size = 0x4, scoped, tag = 'scoped memory for tpu_custom_call.1']
    #allocation7 [shape = 'u8[4096]{0}', space=vmem, size = 0x1000, scoped, tag = 'input window, operand 1, single buffered']
    #allocation8 [shape = 's32[1]{0}', space=sflag, size = 0x4, scoped, tag = 'scoped memory for tpu_custom_call.1']
    #allocation9 [shape = 'u8[512]{0}', space=smem, size = 0x200, scoped, tag = 'output window, operand 0, single buffered']
    %7 = vsyncpa [#allocation5], 0
    %8 = vsyncpa [#allocation8], 0
    %9 = vsyncpa [#allocation6], 0
    // Predicated region
    $region2: #{tpu_custom_call.1} parent=1 // pred_check
      _
    $region3: #{tpu_custom_call.1} parent=1 // pred_check_branch
      %11 = sbr.rel (0) target = $region5
    $region4: #{tpu_custom_call.1} parent=1 // pred_region
      %s13 = ssub.s32 128, 128
      %14 = vsyncadd [#allocation5], %s13
      %s16 = sshll.u32 [#allocation4], 4
      %s17 = int_to_ptr.vmem [resolvable:$true] %s16
      %19 = dma.hbm_to_vmem [thread:$0]  %s0, 128, %s17, [#allocation5]
    $region5: #{tpu_custom_call.1} parent=1 // pred_fallthru
      _
    // Predicated region
    $region6: #{tpu_custom_call.1} parent=1 // pred_check
      _
    $region7: #{tpu_custom_call.1} parent=1 // pred_check_branch
      %21 = sbr.rel (0) target = $region9
    $region8: #{tpu_custom_call.1} parent=1 // pred_region
      %s23 = ssub.s32 128, 128
      %24 = vsyncadd [#allocation8], %s23
      %s26 = sshll.u32 [#allocation7], 4
      %s27 = int_to_ptr.vmem [resolvable:$true] %s26
      %29 = dma.hbm_to_vmem [thread:$0]  %s1, 128, %s27, [#allocation8]
    $region9: #{tpu_custom_call.1} parent=1 // pred_fallthru
      _
    // Predicated region
    $region10: #{tpu_custom_call.1} parent=1 // pred_check
      _
    $region11: #{tpu_custom_call.1} parent=1 // pred_check_branch
      %31 = sbr.rel (0) target = $region13
    $region12: #{tpu_custom_call.1} parent=1 // pred_region
      %32 = dma.done [#allocation5], 128
    $region13: #{tpu_custom_call.1} parent=1 // pred_fallthru
      _
    // Predicated region
    $region14: #{tpu_custom_call.1} parent=1 // pred_check
      _
    $region15: #{tpu_custom_call.1} parent=1 // pred_check_branch
      %34 = sbr.rel (0) target = $region17
    $region16: #{tpu_custom_call.1} parent=1 // pred_region
      %35 = dma.done [#allocation8], 128
    $region17: #{tpu_custom_call.1} parent=1 // pred_fallthru
      _
    %p36 = scmp.eq.s32.totalorder 0, 0
    // Predicated region
    $region18: #{tpu_custom_call.1} parent=1 // pred_check
      %p37 = pneg %p36
    $region19: #{tpu_custom_call.1} parent=1 // pred_check_branch
      %39 = sbr.rel (%p37) target = $region21
    $region20: #{tpu_custom_call.1} parent=1 // pred_region
      %vm40 = vcmask 64512
      %41 = vst.msk [vmem:[#allocation2] sm:$0xff] %vm40, 0.0
      %42 = vst.msk [vmem:[#allocation3] sm:$0xff] %vm40, 0.0
    $region21: #{tpu_custom_call.1} parent=1 // pred_fallthru
      _
    %v43 = vld [vmem:[#allocation4] sm:$0xff]
    %v44 = vld [vmem:[#allocation7] sm:$0xff]
    %v45 = vld [vmem:[#allocation2] sm:$0xff]
    %vm46 = vcmask 261120
    %v48 = vsel %vm46, %v43, 0
    %50 = vmatprep.subr.mxu0 0.0
    %51 = vmatpush1.xpose.msra.mxu0 %v48
    %52 = vmatprep.subr.mxu0 0.0
    %53 = vmatpush1.xpose.msra.mxu0 0.0
    %54 = vmatprep.subr.mxu0 0.0
    %55 = vmatpush1.xpose.msra.mxu0 0.0
    %56 = vmatprep.subr.mxu0 0.0
    %57 = vmatpush1.xpose.msra.mxu0 0.0
    %58 = vmatprep.subr.mxu0 0.0
    %59 = vmatpush1.xpose.msra.mxu0 0.0
    %60 = vmatprep.subr.mxu0 0.0
    %61 = vmatpush1.xpose.msra.mxu0 0.0
    %62 = vmatprep.subr.mxu0 0.0
    %63 = vmatpush1.xpose.msra.mxu0 0.0
    %64 = vmatprep.subr.mxu0 0.0
    %65 = vmatpush1.xpose.msra.mxu0 0.0
    %66 = vmatprep.subr.mxu0 0.0
    %67 = vmatpush1.xpose.msra.mxu0 0.0
    %68 = vmatprep.subr.mxu0 0.0
    %69 = vmatpush1.xpose.msra.mxu0 0.0
    %70 = vmatprep.subr.mxu0 0.0
    %71 = vmatpush1.xpose.msra.mxu0 0.0
    %72 = vmatprep.subr.mxu0 0.0
    %73 = vmatpush1.xpose.msra.mxu0 0.0
    %74 = vmatprep.subr.mxu0 0.0
    %75 = vmatpush1.xpose.msra.mxu0 0.0
    %76 = vmatprep.subr.mxu0 0.0
    %77 = vmatpush1.xpose.msra.mxu0 0.0
    %78 = vmatprep.subr.mxu0 0.0
    %79 = vmatpush1.xpose.msra.mxu0 0.0
    %80 = vmatprep.subr.mxu0 0.0
    %81 = vmatpush1.xpose.msra.mxu0 0.0
    %82 = vmatprep.subr.mxu0 0.0
    %83 = vmatpush1.xpose.msra.mxu0 0.0
    %84 = vmatprep.subr.mxu0 0.0
    %85 = vmatpush1.xpose.msra.mxu0 0.0
    %86 = vmatprep.subr.mxu0 0.0
    %87 = vmatpush1.xpose.msra.mxu0 0.0
    %88 = vmatprep.subr.mxu0 0.0
    %89 = vmatpush1.xpose.msra.mxu0 0.0
    %90 = vmatprep.subr.mxu0 0.0
    %91 = vmatpush1.xpose.msra.mxu0 0.0
    %92 = vmatprep.subr.mxu0 0.0
    %93 = vmatpush1.xpose.msra.mxu0 0.0
    %94 = vmatprep.subr.mxu0 0.0
    %95 = vmatpush1.xpose.msra.mxu0 0.0
    %96 = vmatprep.subr.mxu0 0.0
    %97 = vmatpush1.xpose.msra.mxu0 0.0
    %98 = vmatprep.subr.mxu0 0.0
    %99 = vmatpush1.xpose.msra.mxu0 0.0
    %100 = vmatprep.subr.mxu0 0.0
    %101 = vmatpush1.xpose.msra.mxu0 0.0
    %102 = vmatprep.subr.mxu0 0.0
    %103 = vmatpush1.xpose.msra.mxu0 0.0
    %104 = vmatprep.subr.mxu0 0.0
    %105 = vmatpush1.xpose.msra.mxu0 0.0
    %106 = vmatprep.subr.mxu0 0.0
    %107 = vmatpush1.xpose.msra.mxu0 0.0
    %108 = vmatprep.subr.mxu0 0.0
    %109 = vmatpush1.xpose.msra.mxu0 0.0
    %110 = vmatprep.subr.mxu0 0.0
    %111 = vmatpush1.xpose.msra.mxu0 0.0
    %112 = vmatprep.subr.mxu0 0.0
    %113 = vmatpush1.xpose.msra.mxu0 0.0
    %114 = vmatprep.mubr.f32.mxu0 0.0
    %115 = vmatmul.mubr.f32.gmra.mrb[0].mxu0 %v48
    %v116 = vpop.f32.mrb[0].mxu0
    %v117 = vadd.f32 0.0, %v116
    %v118 = vpop.f32.mrb[0].mxu0
    %119 = vdwg.mxu0
    %v120 = vadd.f32 %v45, %v117
    %vm121 = vcmask 64512
    %122 = vst.msk [vmem:[#allocation2] sm:$0xff] %vm121, %v120
    %v123 = vld [vmem:[#allocation3] sm:$0xff]
    %v125 = vsel %vm46, %v44, 0
    %127 = vmatprep.subr.mxu0 0.0
    %128 = vmatpush1.xpose.msra.mxu0 %v125
    %129 = vmatprep.subr.mxu0 0.0
    %130 = vmatpush1.xpose.msra.mxu0 0.0
    %131 = vmatprep.subr.mxu0 0.0
    %132 = vmatpush1.xpose.msra.mxu0 0.0
    %133 = vmatprep.subr.mxu0 0.0
    %134 = vmatpush1.xpose.msra.mxu0 0.0
    %135 = vmatprep.subr.mxu0 0.0
    %136 = vmatpush1.xpose.msra.mxu0 0.0
    %137 = vmatprep.subr.mxu0 0.0
    %138 = vmatpush1.xpose.msra.mxu0 0.0
    %139 = vmatprep.subr.mxu0 0.0
    %140 = vmatpush1.xpose.msra.mxu0 0.0
    %141 = vmatprep.subr.mxu0 0.0
    %142 = vmatpush1.xpose.msra.mxu0 0.0
    %143 = vmatprep.subr.mxu0 0.0
    %144 = vmatpush1.xpose.msra.mxu0 0.0
    %145 = vmatprep.subr.mxu0 0.0
    %146 = vmatpush1.xpose.msra.mxu0 0.0
    %147 = vmatprep.subr.mxu0 0.0
    %148 = vmatpush1.xpose.msra.mxu0 0.0
    %149 = vmatprep.subr.mxu0 0.0
    %150 = vmatpush1.xpose.msra.mxu0 0.0
    %151 = vmatprep.subr.mxu0 0.0
    %152 = vmatpush1.xpose.msra.mxu0 0.0
    %153 = vmatprep.subr.mxu0 0.0
    %154 = vmatpush1.xpose.msra.mxu0 0.0
    %155 = vmatprep.subr.mxu0 0.0
    %156 = vmatpush1.xpose.msra.mxu0 0.0
    %157 = vmatprep.subr.mxu0 0.0
    %158 = vmatpush1.xpose.msra.mxu0 0.0
    %159 = vmatprep.subr.mxu0 0.0
    %160 = vmatpush1.xpose.msra.mxu0 0.0
    %161 = vmatprep.subr.mxu0 0.0
    %162 = vmatpush1.xpose.msra.mxu0 0.0
    %163 = vmatprep.subr.mxu0 0.0
    %164 = vmatpush1.xpose.msra.mxu0 0.0
    %165 = vmatprep.subr.mxu0 0.0
    %166 = vmatpush1.xpose.msra.mxu0 0.0
    %167 = vmatprep.subr.mxu0 0.0
    %168 = vmatpush1.xpose.msra.mxu0 0.0
    %169 = vmatprep.subr.mxu0 0.0
    %170 = vmatpush1.xpose.msra.mxu0 0.0
    %171 = vmatprep.subr.mxu0 0.0
    %172 = vmatpush1.xpose.msra.mxu0 0.0
    %173 = vmatprep.subr.mxu0 0.0
    %174 = vmatpush1.xpose.msra.mxu0 0.0
    %175 = vmatprep.subr.mxu0 0.0
    %176 = vmatpush1.xpose.msra.mxu0 0.0
    %177 = vmatprep.subr.mxu0 0.0
    %178 = vmatpush1.xpose.msra.mxu0 0.0
    %179 = vmatprep.subr.mxu0 0.0
    %180 = vmatpush1.xpose.msra.mxu0 0.0
    %181 = vmatprep.subr.mxu0 0.0
    %182 = vmatpush1.xpose.msra.mxu0 0.0
    %183 = vmatprep.subr.mxu0 0.0
    %184 = vmatpush1.xpose.msra.mxu0 0.0
    %185 = vmatprep.subr.mxu0 0.0
    %186 = vmatpush1.xpose.msra.mxu0 0.0
    %187 = vmatprep.subr.mxu0 0.0
    %188 = vmatpush1.xpose.msra.mxu0 0.0
    %189 = vmatprep.subr.mxu0 0.0
    %190 = vmatpush1.xpose.msra.mxu0 0.0
    %191 = vmatprep.mubr.f32.mxu0 0.0
    %192 = vmatmul.mubr.f32.gmra.mrb[0].mxu0 %v125
    %v193 = vpop.f32.mrb[0].mxu0
    %v194 = vadd.f32 0.0, %v193
    %v195 = vpop.f32.mrb[0].mxu0
    %196 = vdwg.mxu0
    %v197 = vadd.f32 %v123, %v194
    %198 = vst.msk [vmem:[#allocation3] sm:$0xff] %vm121, %v197
    // Predicated region
    $region22: #{tpu_custom_call.1} parent=1 // pred_check
      %p199 = pneg %p36
    $region23: #{tpu_custom_call.1} parent=1 // pred_check_branch
      %201 = sbr.rel (%p199) target = $region25
    $region24: #{tpu_custom_call.1} parent=1 // pred_region
      %v202 = vld [vmem:[#allocation2] sm:$0xff]
      %v203 = vld [vmem:[#allocation3] sm:$0xff]
      %v204 = vlaneseq
      %v205 = vshrl.u32 %v204, 7
      %v206 = vlaneseq
      %v207 = vand.u32 %v206, 127
      %vm208 = vcmp.eq.s32.totalorder %v205, %v207
      %v209 = vsel %vm208, %v202, 0.0
      %v210 = vsel %vm121, %v209, 0.0
      %211 = vadd.xlane.f32.xlu0 %v210
      %v212 = vpop.xlane.xlu0 %211
      %v213 = vrot.slane %v210, 4
      %v214 = vadd.f32 %v210, %v213
      %v215 = vrot.slane %v214, 2
      %v216 = vadd.f32 %v214, %v215
      %v217 = vrot.slane %v216, 1
      %v218 = vadd.f32 %v216, %v217
      %v219 = vrsqrt.pop %v212
      %v220 = vmul.f32 %v212, %v219
      %vm221 = vcmp.eq.f32.partialorder %v212, inf
      %v222 = vsel %vm221, %v212, %v220
      %vm223 = vcmp.eq.f32.partialorder %v212, 0.0
      %v224 = vand.u32 %v212, 2147483648
      %v225 = vsel %vm223, %v224, %v222
      %v226 = vadd.f32 %v225, 1e-07
      %v227 = vrcp.pop %v226
      %v228 = vrsqrt.pop %v218
      %v229 = vmul.f32 %v218, %v228
      %vm230 = vcmp.eq.f32.partialorder %v218, inf
      %v231 = vsel %vm230, %v218, %v229
      %vm232 = vcmp.eq.f32.partialorder %v218, 0.0
      %v233 = vand.u32 %v218, 2147483648
      %v234 = vsel %vm232, %v233, %v231
      %v235 = vadd.f32 %v234, 1e-07
      %v236 = vrcp.pop %v235
      %v237 = vmul.f32 %v202, %v227
      %v238 = vmul.f32 %v237, %v236
      %v239 = vadd.f32 %v238, 1.0
      %v240 = vmul.f32 %v239, 0.5
      %v241 = vsel %vm208, %v203, 0.0
      %v242 = vsel %vm121, %v241, 0.0
      %243 = vadd.xlane.f32.xlu0 %v242
      %v244 = vpop.xlane.xlu0 %243
      %v245 = vrot.slane %v242, 4
      %v246 = vadd.f32 %v242, %v245
      %v247 = vrot.slane %v246, 2
      %v248 = vadd.f32 %v246, %v247
      %v249 = vrot.slane %v248, 1
      %v250 = vadd.f32 %v248, %v249
      %v251 = vrsqrt.pop %v244
      %v252 = vmul.f32 %v244, %v251
      %vm253 = vcmp.eq.f32.partialorder %v244, inf
      %v254 = vsel %vm253, %v244, %v252
      %vm255 = vcmp.eq.f32.partialorder %v244, 0.0
      %v256 = vand.u32 %v244, 2147483648
      %v257 = vsel %vm255, %v256, %v254
      %v258 = vadd.f32 %v257, 1e-07
      %v259 = vrcp.pop %v258
      %v260 = vrsqrt.pop %v250
      %v261 = vmul.f32 %v250, %v260
      %vm262 = vcmp.eq.f32.partialorder %v250, inf
      %v263 = vsel %vm262, %v250, %v261
      %vm264 = vcmp.eq.f32.partialorder %v250, 0.0
      %v265 = vand.u32 %v250, 2147483648
      %v266 = vsel %vm264, %v265, %v263
      %v267 = vadd.f32 %v266, 1e-07
      %v268 = vrcp.pop %v267
      %v269 = vmul.f32 %v203, %v259
      %v270 = vmul.f32 %v269, %v268
      %v271 = vadd.f32 %v270, 1.0
      %v272 = vmul.f32 %v271, 0.5
      %v273 = vsel %vm121, %v240, 0.0
      %274 = vadd.xlane.f32.xlu0 %v273
      %v275 = vpop.xlane.xlu0 %274
      %v276 = vrcp.pop %v275
      %v277 = vmul.f32 %v240, %v276
      %v278 = vsel %vm121, %v272, 0.0
      %279 = vadd.xlane.f32.xlu0 %v278
      %v280 = vpop.xlane.xlu0 %279
      %v281 = vrcp.pop %v280
      %v282 = vmul.f32 %v272, %v281
      %v283 = vadd.f32 %v282, 1e-07
      %v284 = vlog2.pop %v283
      %v285 = vmul.f32 %v284, 0.6931472
      %v286 = vadd.f32 %v277, 1e-07
      %v287 = vlog2.pop %v286
      %v288 = vmul.f32 %v287, 0.6931472
      %v289 = vsub.f32 %v285, %v288
      %v290 = vmul.f32 %v282, %v289
      %v291 = vsel %vm121, %v290, 0.0
      %292 = vadd.xlane.f32.xlu0 %v291
      %v293 = vpop.xlane.xlu0 %292
      %v294 = vrot.slane %v293, 4
      %v295 = vadd.f32 %v293, %v294
      %v296 = vrot.slane %v295, 2
      %v297 = vadd.f32 %v295, %v296
      %v298 = vrot.slane %v297, 1
      %v299 = vadd.f32 %v297, %v298
      %s300 = vtos %v299
      %v301 = vrcp.pop 64.0
      %s302 = vtos %v301
      %s303 = smul.f32 %s300, %s302
      %s304 = scalar_lea.smem [#allocation9], 0
      %305 = sst [smem:[%s304]] %s303
    $region25: #{tpu_custom_call.1} parent=1 // pred_fallthru
      _
    // Predicated region
    $region26: #{tpu_custom_call.1} parent=1 // pred_check
      _
    $region27: #{tpu_custom_call.1} parent=1 // pred_check_branch
      %307 = sbr.rel (0) target = $region29
    $region28: #{tpu_custom_call.1} parent=1 // pred_region
      %s309 = ssub.s32 16, 16
      %310 = vsyncadd [#allocation6], %s309
      %313 = dma.smem_to_hbm [#allocation9], 16, %s2, [#allocation6]
    $region29: #{tpu_custom_call.1} parent=1 // pred_fallthru
      _
    // Predicated region
    $region30: #{tpu_custom_call.1} parent=1 // pred_check
      _
    $region31: #{tpu_custom_call.1} parent=1 // pred_check_branch
      %315 = sbr.rel (0) target = $region33
    $region32: #{tpu_custom_call.1} parent=1 // pred_region
      %316 = dma.done [#allocation6], 16
    $region33: #{tpu_custom_call.1} parent=1 // pred_fallthru
      _
    %317 = sfence
    %318 = vsyncpa [#allocation5], 1
    %319 = vsyncpa [#allocation8], 1
    %320 = vsyncpa [#allocation6], 1

</llo_original>
